<compile_context>
chip_gen: v7x
topology: tpu7x:2x2x1
jax: 0.10.0
libtpu: 0.0.40
codegen_flags: <defaults>
</compile_context>

<pallas_src>
import functools

import jax
import jax.numpy as jnp
from jax.experimental import pallas as pl
from jax.experimental.pallas import tpu as pltpu


def _softplus_exact(x):
    # Numerically stable softplus, matches torch.nn.functional.softplus (beta=1).
    return jnp.maximum(x, 0.0) + jnp.log1p(jnp.exp(-jnp.abs(x)))


def _softplus_bf16_eup(x):
    # exp/log1p on the EUP in bf16 (v6e/v7x: ~2x EUP throughput); the linear
    # part (max) stays f32.  ~1e-3 relative error by design.
    t = jnp.log1p(jnp.exp(-jnp.abs(x).astype(jnp.bfloat16))).astype(jnp.float32)
    return jnp.maximum(x, 0.0) + t


def kappa_kernel(h_ref, w1_ref, b1_ref, w2_ref, b2_ref, wmu_ref, bmu_ref, o_ref,
                 *, fast_softplus: bool):
    # h_ref:  (1, TB)            batch on lanes
    # w1_ref: (fc1, 1)    b1_ref: (fc1, 1)
    # w2_ref: (fc2, fc1)  b2_ref: (fc2, 1)
    # wmu_ref:(1, fc2)    bmu_ref:(1, 1)
    # o_ref:  (1, TB)
    softplus = _softplus_bf16_eup if fast_softplus else _softplus_exact

    h = h_ref[...]                                                     # (1, TB)

    # Layer 1: Linear(1 -> fc1).  K = 1, so a broadcast FMA on the VPU.
    x = softplus(w1_ref[...] * h + b1_ref[...])                        # (fc1, TB)

    # Layer 2: Linear(fc1 -> fc2).  Lane-dense MXU matmul (N = TB).
    x = softplus(jnp.dot(w2_ref[...], x,
                         preferred_element_type=jnp.float32)
                 + b2_ref[...])                                        # (fc2, TB)

    # Output layer: Linear(fc2 -> 1) as a (1,fc2)@(fc2,TB) matmul on the idle MXU.
    o_ref[...] = (jnp.dot(wmu_ref[...], x,
                          preferred_element_type=jnp.float32)
                  + bmu_ref[...])                                      # (1, TB)


def kappa_forward(h, params, *, tb=4096, fast_softplus=False):
    """h: (B, 1) float32.

    params layout (kernel-friendly):
        w1 (fc1, 1), b1 (fc1, 1), w2 (fc2, fc1), b2 (fc2, 1),
        wmu (1, fc2), bmu (1, 1)            # wmu/bmu are the PyTorch mu layout
    Returns (B, 1) float32, same math as the PyTorch forward.
    """
    assert tb % 512 == 0, "tb must be a multiple of 512 (lane-aligned tiles)"
    B = h.shape[0]
    w1, b1, w2, b2, wmu, bmu = (params["w1"], params["b1"], params["w2"],
                                params["b2"], params["wmu"], params["bmu"])

    h_row = h.reshape(1, B).astype(jnp.float32)          # batch on lanes

    # Tile selection:
    #   * lane-aligned tiles (multiple of 512),
    #   * capped at roughly B/2 so the grid has >=2 steps when B is moderate
    #     (v7x megacore: the "parallel" axis needs >=2 steps to shard),
    #   * single full-array block when B fits in one tile (no (8,128) constraint).
    half_up = pl.cdiv(pl.cdiv(B, 2), 512) * 512
    TB = min(tb, half_up)
    if B <= TB:
        TB = B                                           # block == full array
    grid = (pl.cdiv(B, TB),)                             # ragged last block OK

    def resident(arr):                                   # VMEM-resident weights
        return pl.BlockSpec(arr.shape, lambda i: (0, 0))

    out_row = pl.pallas_call(
        functools.partial(kappa_kernel, fast_softplus=fast_softplus),
        out_shape=jax.ShapeDtypeStruct((1, B), jnp.float32),
        grid=grid,
        in_specs=[
            pl.BlockSpec((1, TB), lambda i: (0, i)),     # h tile (streamed)
            resident(w1), resident(b1),
            resident(w2), resident(b2),
            resident(wmu), resident(bmu),
        ],
        out_specs=pl.BlockSpec((1, TB), lambda i: (0, i)),  # lane-dense output tile
        compiler_params=pltpu.CompilerParams(
            dimension_semantics=("parallel",)),          # megacore sharding on v7x
    )(h_row, w1, b1, w2, b2, wmu, bmu)

    return out_row.reshape(B, 1)


def init_params(key, fc1_dims, fc2_dims):
    """Deterministic init mirroring nn.Linear defaults (uniform +/- 1/sqrt(fan_in))."""
    ks = jax.random.split(key, 6)

    def lin(kw, kb, fan_in, fan_out):
        bound = 1.0 / (fan_in ** 0.5)
        w = jax.random.uniform(kw, (fan_out, fan_in), jnp.float32, -bound, bound)
        b = jax.random.uniform(kb, (fan_out, 1), jnp.float32, -bound, bound)
        return w, b

    w1, b1 = lin(ks[0], ks[1], 1, fc1_dims)            # (fc1, 1), (fc1, 1)
    w2, b2 = lin(ks[2], ks[3], fc1_dims, fc2_dims)     # (fc2, fc1), (fc2, 1)
    wmu, bmu = lin(ks[4], ks[5], fc2_dims, 1)          # (1, fc2), (1, 1)
    return {"w1": w1, "b1": b1, "w2": w2, "b2": b2, "wmu": wmu, "bmu": bmu}


def kappa_forward_ref(h, p):
    """Pure-JAX reference (standard (B, features) layout) for correctness check."""
    x = jax.nn.softplus(h @ p["w1"].T + p["b1"].T)     # (B, fc1)
    x = jax.nn.softplus(x @ p["w2"].T + p["b2"].T)     # (B, fc2)
    return x @ p["wmu"].T + p["bmu"].T                 # (B, 1)


if __name__ == "__main__":
    key = jax.random.PRNGKey(0)
    k_param, k_in1, k_in2 = jax.random.split(key, 3)

    fc1_dims, fc2_dims = 32, 32
    params = init_params(k_param, fc1_dims, fc2_dims)

    # Tolerances are loose enough to cover the (backend-default) f32-matmul
    # precision mode differing between XLA and Mosaic; structural/layout bugs
    # would blow far past them.
    TOL = dict(atol=2e-2, rtol=2e-2)

    # Small RL-style batch: single full-array block.
    batch = 8
    h = jax.random.normal(k_in1, (batch, 1), jnp.float32)
    out = kappa_forward(h, params)
    jax.block_until_ready(out)
    ref = kappa_forward_ref(h, params)
    assert out.shape == (batch, 1)
    assert jnp.allclose(out, ref, **TOL)

    # Larger, non-multiple batch: >=2 grid steps (megacore on v7x) and a
    # Pallas-handled ragged last block (no wrapper pad / slice).
    batch2 = 1000
    h2 = jax.random.normal(k_in2, (batch2, 1), jnp.float32)
    out2 = kappa_forward(h2, params)
    jax.block_until_ready(out2)
    ref2 = kappa_forward_ref(h2, params)
    assert out2.shape == (batch2, 1)
    assert jnp.allclose(out2, ref2, **TOL)

    # bf16-EUP softplus speed path (v6e/v7x); intentionally approximate.
    out2_fast = kappa_forward(h2, params, fast_softplus=True)
    jax.block_until_ready(out2_fast)
    assert out2_fast.shape == (batch2, 1)
    assert jnp.allclose(out2_fast, ref2, atol=1e-1, rtol=1e-1)

    print("KERNEL_OK")
</pallas_src>

<mosaic_0001>
module attributes {stable_mosaic.version = 11 : i64} {
  func.func @kappa_kernel(%arg0: i32, %arg1: memref<1x8xf32, #tpu.memory_space<vmem>>, %arg2: memref<32x1xf32, #tpu.memory_space<vmem>>, %arg3: memref<32x1xf32, #tpu.memory_space<vmem>>, %arg4: memref<32x32xf32, #tpu.memory_space<vmem>>, %arg5: memref<32x1xf32, #tpu.memory_space<vmem>>, %arg6: memref<1x32xf32, #tpu.memory_space<vmem>>, %arg7: memref<1x1xf32, #tpu.memory_space<vmem>>, %arg8: memref<1x8xf32, #tpu.memory_space<vmem>>) attributes {dimension_semantics = [#tpu.dimension_semantics<parallel>], iteration_bounds = array<i64: 1>, scalar_prefetch = 0 : i64, scratch_operands = 0 : i64, tpu.core_type = #tpu.core_type<tc>, window_params = [{transform_indices = @transform_0, window_bounds = array<i64: 1, 8>}, {pipeline_mode = #tpu.pipeline_mode<synchronous>, transform_indices = @transform_1, window_bounds = array<i64: 32, 1>}, {pipeline_mode = #tpu.pipeline_mode<synchronous>, transform_indices = @transform_2, window_bounds = array<i64: 32, 1>}, {pipeline_mode = #tpu.pipeline_mode<synchronous>, transform_indices = @transform_3, window_bounds = array<i64: 32, 32>}, {pipeline_mode = #tpu.pipeline_mode<synchronous>, transform_indices = @transform_4, window_bounds = array<i64: 32, 1>}, {pipeline_mode = #tpu.pipeline_mode<synchronous>, transform_indices = @transform_5, window_bounds = array<i64: 1, 32>}, {pipeline_mode = #tpu.pipeline_mode<synchronous>, transform_indices = @transform_6, window_bounds = array<i64: 1, 1>}, {transform_indices = @transform_7, window_bounds = array<i64: 1, 8>}]} {
    %c0 = arith.constant 0 : index
    %c0_0 = arith.constant 0 : index
    %0 = vector.load %arg1[%c0, %c0_0] : memref<1x8xf32, #tpu.memory_space<vmem>>, vector<1x8xf32>
    %c0_1 = arith.constant 0 : index
    %c0_2 = arith.constant 0 : index
    %1 = vector.load %arg2[%c0_1, %c0_2] : memref<32x1xf32, #tpu.memory_space<vmem>>, vector<32x1xf32>
    %2 = vector.broadcast %1 : vector<32x1xf32> to vector<32x8xf32>
    %3 = vector.broadcast %0 : vector<1x8xf32> to vector<32x8xf32>
    %4 = arith.mulf %2, %3 : vector<32x8xf32>
    %c0_3 = arith.constant 0 : index
    %c0_4 = arith.constant 0 : index
    %5 = vector.load %arg3[%c0_3, %c0_4] : memref<32x1xf32, #tpu.memory_space<vmem>>, vector<32x1xf32>
    %6 = vector.broadcast %5 : vector<32x1xf32> to vector<32x8xf32>
    %7 = arith.addf %4, %6 : vector<32x8xf32>
    %cst = arith.constant 0.000000e+00 : f32
    %8 = vector.broadcast %cst : f32 to vector<32x8xf32>
    %9 = arith.maximumf %7, %8 : vector<32x8xf32>
    %10 = math.absf %7 : vector<32x8xf32>
    %cst_5 = arith.constant 0.000000e+00 : f32
    %11 = vector.broadcast %cst_5 : f32 to vector<32x8xf32>
    %12 = arith.subf %11, %10 : vector<32x8xf32>
    %13 = math.exp %12 : vector<32x8xf32>
    %14 = math.log1p %13 : vector<32x8xf32>
    %15 = arith.addf %9, %14 : vector<32x8xf32>
    %c0_6 = arith.constant 0 : index
    %c0_7 = arith.constant 0 : index
    %16 = vector.load %arg4[%c0_6, %c0_7] : memref<32x32xf32, #tpu.memory_space<vmem>>, vector<32x32xf32>
    %cst_8 = arith.constant dense<0.000000e+00> : vector<32x8xf32>
    %17 = tpu.matmul %16, %15, %cst_8 {dimension_numbers = #tpu.dot_dimension_numbers<[1], [0], [0], [1], [0, 0, 1, 1], [], []>} : vector<32x32xf32>, vector<32x8xf32>, vector<32x8xf32> -> vector<32x8xf32>
    %c0_9 = arith.constant 0 : index
    %c0_10 = arith.constant 0 : index
    %18 = vector.load %arg5[%c0_9, %c0_10] : memref<32x1xf32, #tpu.memory_space<vmem>>, vector<32x1xf32>
    %19 = vector.broadcast %18 : vector<32x1xf32> to vector<32x8xf32>
    %20 = arith.addf %17, %19 : vector<32x8xf32>
    %cst_11 = arith.constant 0.000000e+00 : f32
    %21 = vector.broadcast %cst_11 : f32 to vector<32x8xf32>
    %22 = arith.maximumf %20, %21 : vector<32x8xf32>
    %23 = math.absf %20 : vector<32x8xf32>
    %cst_12 = arith.constant 0.000000e+00 : f32
    %24 = vector.broadcast %cst_12 : f32 to vector<32x8xf32>
    %25 = arith.subf %24, %23 : vector<32x8xf32>
    %26 = math.exp %25 : vector<32x8xf32>
    %27 = math.log1p %26 : vector<32x8xf32>
    %28 = arith.addf %22, %27 : vector<32x8xf32>
    %c0_13 = arith.constant 0 : index
    %c0_14 = arith.constant 0 : index
    %29 = vector.load %arg6[%c0_13, %c0_14] : memref<1x32xf32, #tpu.memory_space<vmem>>, vector<1x32xf32>
    %cst_15 = arith.constant dense<0.000000e+00> : vector<1x8xf32>
    %30 = tpu.matmul %29, %28, %cst_15 {dimension_numbers = #tpu.dot_dimension_numbers<[1], [0], [0], [1], [0, 0, 1, 1], [], []>} : vector<1x32xf32>, vector<32x8xf32>, vector<1x8xf32> -> vector<1x8xf32>
    %c0_16 = arith.constant 0 : index
    %c0_17 = arith.constant 0 : index
    %31 = vector.load %arg7[%c0_16, %c0_17] : memref<1x1xf32, #tpu.memory_space<vmem>>, vector<1x1xf32>
    %32 = vector.broadcast %31 : vector<1x1xf32> to vector<1x8xf32>
    %33 = arith.addf %30, %32 : vector<1x8xf32>
    %c0_18 = arith.constant 0 : index
    %c0_19 = arith.constant 0 : index
    %34 = vector.load %arg8[%c0_18, %c0_19] : memref<1x8xf32, #tpu.memory_space<vmem>>, vector<1x8xf32>
    tpu.vector_store %arg8[%c0_18, %c0_19], %33 {strides = array<i32>} : memref<1x8xf32, #tpu.memory_space<vmem>>, vector<1x8xf32>,
    return
  }
  func.func @transform_0(%arg0: i32) -> (i32, i32) {
    %c0_i32 = arith.constant 0 : i32
    %c0_i32_0 = arith.constant 0 : i32
    return %c0_i32, %arg0 : i32, i32
  }
  func.func @transform_1(%arg0: i32) -> (i32, i32) {
    %c0_i32 = arith.constant 0 : i32
    %c0_i32_0 = arith.constant 0 : i32
    %c0_i32_1 = arith.constant 0 : i32
    return %c0_i32, %c0_i32_0 : i32, i32
  }
  func.func @transform_2(%arg0: i32) -> (i32, i32) {
    %c0_i32 = arith.constant 0 : i32
    %c0_i32_0 = arith.constant 0 : i32
    %c0_i32_1 = arith.constant 0 : i32
    return %c0_i32, %c0_i32_0 : i32, i32
  }
  func.func @transform_3(%arg0: i32) -> (i32, i32) {
    %c0_i32 = arith.constant 0 : i32
    %c0_i32_0 = arith.constant 0 : i32
    %c0_i32_1 = arith.constant 0 : i32
    return %c0_i32, %c0_i32_0 : i32, i32
  }
  func.func @transform_4(%arg0: i32) -> (i32, i32) {
    %c0_i32 = arith.constant 0 : i32
    %c0_i32_0 = arith.constant 0 : i32
    %c0_i32_1 = arith.constant 0 : i32
    return %c0_i32, %c0_i32_0 : i32, i32
  }
  func.func @transform_5(%arg0: i32) -> (i32, i32) {
    %c0_i32 = arith.constant 0 : i32
    %c0_i32_0 = arith.constant 0 : i32
    %c0_i32_1 = arith.constant 0 : i32
    return %c0_i32, %c0_i32_0 : i32, i32
  }
  func.func @transform_6(%arg0: i32) -> (i32, i32) {
    %c0_i32 = arith.constant 0 : i32
    %c0_i32_0 = arith.constant 0 : i32
    %c0_i32_1 = arith.constant 0 : i32
    return %c0_i32, %c0_i32_0 : i32, i32
  }
  func.func @transform_7(%arg0: i32) -> (i32, i32) {
    %c0_i32 = arith.constant 0 : i32
    %c0_i32_0 = arith.constant 0 : i32
    return %c0_i32, %arg0 : i32, i32
  }
}

</mosaic_0001>

<llo_original>
// kernel: tpu_custom_call.1
$region0: #{tpu_custom_call.1}
  #allocation0 [shape = 'u32[]', space=smem, size = 0x4, offset = 0x4, fixed_abs, tag = 'smem constant byte address 0x4 - core index']
  #allocation1 [shape = 'u32[144,128]{1,0:T(1,128)}', space=vmem, size = 0x12000, scoped, tag = 'internal scratch']
  #allocation2 [shape = 'f32[1,1]{1,0:T(1,128)S(1)}', space=vmem, size = 0x200, scoped, tag = 'scoped memory for tpu_custom_call.1']
  %s0 = inlined_call_operand.vmem [shape: f32[1,8], index: 0, kind: input, shape index: {}]
  %s1 = inlined_call_operand.vmem [shape: f32[32,1], index: 1, kind: input, shape index: {}]
  %s2 = inlined_call_operand.vmem [shape: f32[32,1], index: 2, kind: input, shape index: {}]
  %s3 = inlined_call_operand.vmem [shape: f32[32,32], index: 3, kind: input, shape index: {}]
  %s4 = inlined_call_operand.vmem [shape: f32[32,1], index: 4, kind: input, shape index: {}]
  %s5 = inlined_call_operand.vmem [shape: f32[1,32], index: 5, kind: input, shape index: {}]
  %s6 = inlined_call_operand.<no memory space> [shape: f32[1,1], index: 6, kind: input, shape index: {}]
  %s7 = inlined_call_operand.hbm [shape: f32[1,8], index: 7, kind: output, shape index: {}]
  %s8 = sld [smem:[#allocation0]]
  $region38: #{tpu_custom_call.1} parent=0
    _
  %s10 = ssub.s32 1, %s8
  %s11 = scalar_select 0, %s10, %s8
  %v12 = vstv %s6
  %13 = vst [vmem:[#allocation2] sm:$0x1] %v12
  $region1: #{tpu_custom_call.1} parent=0
    #allocation3 [shape = 'u8[512]{0}', space=vmem, size = 0x400, scoped, tag = 'output window, operand 0, single buffered']
    #allocation4 [shape = 's32[1]{0}', space=sflag, size = 0x4, scoped, tag = 'scoped memory for tpu_custom_call.1']
    %14 = vsyncpa [#allocation4], 0
    // Predicated region
    $region2: #{tpu_custom_call.1} parent=1 // pred_check
      _
    $region3: #{tpu_custom_call.1} parent=1 // pred_check_branch
      %16 = sbr.rel (0) target = $region5
    $region4: #{tpu_custom_call.1} parent=1 // pred_region
      _
    $region5: #{tpu_custom_call.1} parent=1 // pred_fallthru
      _
    // Predicated region
    $region6: #{tpu_custom_call.1} parent=1 // pred_check
      _
    $region7: #{tpu_custom_call.1} parent=1 // pred_check_branch
      %18 = sbr.rel (0) target = $region9
    $region8: #{tpu_custom_call.1} parent=1 // pred_region
      _
    $region9: #{tpu_custom_call.1} parent=1 // pred_fallthru
      _
    // Predicated region
    $region10: #{tpu_custom_call.1} parent=1 // pred_check
      _
    $region11: #{tpu_custom_call.1} parent=1 // pred_check_branch
      %20 = sbr.rel (0) target = $region13
    $region12: #{tpu_custom_call.1} parent=1 // pred_region
      _
    $region13: #{tpu_custom_call.1} parent=1 // pred_fallthru
      _
    // Predicated region
    $region14: #{tpu_custom_call.1} parent=1 // pred_check
      _
    $region15: #{tpu_custom_call.1} parent=1 // pred_check_branch
      %22 = sbr.rel (0) target = $region17
    $region16: #{tpu_custom_call.1} parent=1 // pred_region
      _
    $region17: #{tpu_custom_call.1} parent=1 // pred_fallthru
      _
    // Predicated region
    $region18: #{tpu_custom_call.1} parent=1 // pred_check
      _
    $region19: #{tpu_custom_call.1} parent=1 // pred_check_branch
      %24 = sbr.rel (0) target = $region21
    $region20: #{tpu_custom_call.1} parent=1 // pred_region
      _
    $region21: #{tpu_custom_call.1} parent=1 // pred_fallthru
      _
    // Predicated region
    $region22: #{tpu_custom_call.1} parent=1 // pred_check
      _
    $region23: #{tpu_custom_call.1} parent=1 // pred_check_branch
      %26 = sbr.rel (0) target = $region25
    $region24: #{tpu_custom_call.1} parent=1 // pred_region
      _
    $region25: #{tpu_custom_call.1} parent=1 // pred_fallthru
      _
    // Predicated region
    $region26: #{tpu_custom_call.1} parent=1 // pred_check
      _
    $region27: #{tpu_custom_call.1} parent=1 // pred_check_branch
      %28 = sbr.rel (0) target = $region29
    $region28: #{tpu_custom_call.1} parent=1 // pred_region
      _
    $region29: #{tpu_custom_call.1} parent=1 // pred_fallthru
      _
    %v29 = vld [vmem:[%s0] sm:$0x1]
    %v30 = vld [vmem:[%s1] sm:$0xff]
    %v31 = vld [vmem:[%s1 + $0x8] sm:$0xff]
    %v32 = vld [vmem:[%s1 + $0x10] sm:$0xff]
    %v33 = vld [vmem:[%s1 + $0x18] sm:$0xff]
    %35 = vset.pattern.permute.xlu0 0
    %36 = vperm.xlu0 %35, %v30
    %v37 = vpop.permute.xlu0 %36
    %40 = vset.pattern.permute.xlu0 0
    %41 = vperm.xlu0 %40, %v31
    %v42 = vpop.permute.xlu0 %41
    %45 = vset.pattern.permute.xlu0 0
    %46 = vperm.xlu0 %45, %v32
    %v47 = vpop.permute.xlu0 %46
    %50 = vset.pattern.permute.xlu0 0
    %51 = vperm.xlu0 %50, %v33
    %v52 = vpop.permute.xlu0 %51
    %v55 = vlaneseq
    %v56 = vshrl.u32 %v55, 7
    %v57 = vsub.s32 0, %v56
    %v58 = vrot.slane %v29, %v57
    %v60 = vmul.f32 %v37, %v58
    %v61 = vmul.f32 %v42, %v58
    %v62 = vmul.f32 %v47, %v58
    %v63 = vmul.f32 %v52, %v58
    %v64 = vld [vmem:[%s2] sm:$0xff]
    %v65 = vld [vmem:[%s2 + $0x8] sm:$0xff]
    %v66 = vld [vmem:[%s2 + $0x10] sm:$0xff]
    %v67 = vld [vmem:[%s2 + $0x18] sm:$0xff]
    %69 = vset.pattern.permute.xlu0 0
    %70 = vperm.xlu0 %69, %v64
    %v71 = vpop.permute.xlu0 %70
    %74 = vset.pattern.permute.xlu0 0
    %75 = vperm.xlu0 %74, %v65
    %v76 = vpop.permute.xlu0 %75
    %79 = vset.pattern.permute.xlu0 0
    %80 = vperm.xlu0 %79, %v66
    %v81 = vpop.permute.xlu0 %80
    %84 = vset.pattern.permute.xlu0 0
    %85 = vperm.xlu0 %84, %v67
    %v86 = vpop.permute.xlu0 %85
    %v88 = vadd.f32 %v60, %v71
    %v89 = vadd.f32 %v61, %v76
    %v90 = vadd.f32 %v62, %v81
    %v91 = vadd.f32 %v63, %v86
    %v92 = vmax.f32 %v88, 0.0
    %v93 = vmax.f32 %v89, 0.0
    %v94 = vmax.f32 %v90, 0.0
    %v95 = vmax.f32 %v91, 0.0
    %v96 = vand.u32 2147483647, %v88
    %v97 = vand.u32 2147483647, %v89
    %v98 = vand.u32 2147483647, %v90
    %v99 = vand.u32 2147483647, %v91
    %v100 = vsub.f32 0.0, %v96
    %v101 = vsub.f32 0.0, %v97
    %v102 = vsub.f32 0.0, %v98
    %v103 = vsub.f32 0.0, %v99
    %v104 = vmul.f32 %v100, 1.442695
    %v105 = vpow.pop %v104
    %v106 = vmul.f32 %v101, 1.442695
    %v107 = vpow.pop %v106
    %v108 = vmul.f32 %v102, 1.442695
    %v109 = vpow.pop %v108
    %v110 = vmul.f32 %v103, 1.442695
    %v111 = vpow.pop %v110
    %v112 = vadd.f32 %v105, 1.0
    %v113 = vlog2.pop %v112
    %v114 = vmul.f32 %v113, 0.6931472
    %v115 = vmul.f32 -0.5, %v105
    %v116 = vadd.f32 %v115, 1.0
    %v117 = vmul.f32 %v116, %v105
    %v118 = vand.u32 2147483647, %v105
    %vm119 = vcmp.lt.f32.partialorder %v118, 0.0004427343
    %v120 = vsel %vm119, %v117, %v114
    %v121 = vadd.f32 %v107, 1.0
    %v122 = vlog2.pop %v121
    %v123 = vmul.f32 %v122, 0.6931472
    %v124 = vmul.f32 -0.5, %v107
    %v125 = vadd.f32 %v124, 1.0
    %v126 = vmul.f32 %v125, %v107
    %v127 = vand.u32 2147483647, %v107
    %vm128 = vcmp.lt.f32.partialorder %v127, 0.0004427343
    %v129 = vsel %vm128, %v126, %v123
    %v130 = vadd.f32 %v109, 1.0
    %v131 = vlog2.pop %v130
    %v132 = vmul.f32 %v131, 0.6931472
    %v133 = vmul.f32 -0.5, %v109
    %v134 = vadd.f32 %v133, 1.0
    %v135 = vmul.f32 %v134, %v109
    %v136 = vand.u32 2147483647, %v109
    %vm137 = vcmp.lt.f32.partialorder %v136, 0.0004427343
    %v138 = vsel %vm137, %v135, %v132
    %v139 = vadd.f32 %v111, 1.0
    %v140 = vlog2.pop %v139
    %v141 = vmul.f32 %v140, 0.6931472
    %v142 = vmul.f32 -0.5, %v111
    %v143 = vadd.f32 %v142, 1.0
    %v144 = vmul.f32 %v143, %v111
    %v145 = vand.u32 2147483647, %v111
    %vm146 = vcmp.lt.f32.partialorder %v145, 0.0004427343
    %v147 = vsel %vm146, %v144, %v141
    %v148 = vadd.f32 %v92, %v120
    %v149 = vadd.f32 %v93, %v129
    %v150 = vadd.f32 %v94, %v138
    %v151 = vadd.f32 %v95, %v147
    %v152 = vld [vmem:[%s3] sm:$0xff]
    %v153 = vld [vmem:[%s3 + $0x8] sm:$0xff]
    %v154 = vld [vmem:[%s3 + $0x10] sm:$0xff]
    %v155 = vld [vmem:[%s3 + $0x18] sm:$0xff]
    %v156 = vld [vmem:[%s4] sm:$0xff]
    %v157 = vld [vmem:[%s4 + $0x8] sm:$0xff]
    %v158 = vld [vmem:[%s4 + $0x10] sm:$0xff]
    %v159 = vld [vmem:[%s4 + $0x18] sm:$0xff]
    %161 = vset.pattern.permute.xlu0 0
    %162 = vperm.xlu0 %161, %v156
    %v163 = vpop.permute.xlu0 %162
    %166 = vset.pattern.permute.xlu0 0
    %167 = vperm.xlu0 %166, %v157
    %v168 = vpop.permute.xlu0 %167
    %171 = vset.pattern.permute.xlu0 0
    %172 = vperm.xlu0 %171, %v158
    %v173 = vpop.permute.xlu0 %172
    %176 = vset.pattern.permute.xlu0 0
    %177 = vperm.xlu0 %176, %v159
    %v178 = vpop.permute.xlu0 %177
    %vm180 = vcmask 261120
    %v182 = vsel %vm180, %v152, 0
    %v185 = vsel %vm180, %v153, 0
    %v188 = vsel %vm180, %v154, 0
    %v191 = vsel %vm180, %v155, 0
    %193 = vmatprep.subr.mxu0 0.0
    %194 = vmatpush1.msra.mxu0 %v148
    %195 = vmatprep.subr.mxu0 0.0
    %196 = vmatpush1.msra.mxu0 %v149
    %197 = vmatprep.subr.mxu0 0.0
    %198 = vmatpush1.msra.mxu0 %v150
    %199 = vmatprep.subr.mxu0 0.0
    %200 = vmatpush1.msra.mxu0 %v151
    %201 = vmatprep.subr.mxu0 0.0
    %202 = vmatpush1.msra.mxu0 0.0
    %203 = vmatprep.subr.mxu0 0.0
    %204 = vmatpush1.msra.mxu0 0.0
    %205 = vmatprep.subr.mxu0 0.0
    %206 = vmatpush1.msra.mxu0 0.0
    %207 = vmatprep.subr.mxu0 0.0
    %208 = vmatpush1.msra.mxu0 0.0
    %209 = vmatprep.subr.mxu0 0.0
    %210 = vmatpush1.msra.mxu0 0.0
    %211 = vmatprep.subr.mxu0 0.0
    %212 = vmatpush1.msra.mxu0 0.0
    %213 = vmatprep.subr.mxu0 0.0
    %214 = vmatpush1.msra.mxu0 0.0
    %215 = vmatprep.subr.mxu0 0.0
    %216 = vmatpush1.msra.mxu0 0.0
    %217 = vmatprep.subr.mxu0 0.0
    %218 = vmatpush1.msra.mxu0 0.0
    %219 = vmatprep.subr.mxu0 0.0
    %220 = vmatpush1.msra.mxu0 0.0
    %221 = vmatprep.subr.mxu0 0.0
    %222 = vmatpush1.msra.mxu0 0.0
    %223 = vmatprep.subr.mxu0 0.0
    %224 = vmatpush1.msra.mxu0 0.0
    %225 = vmatprep.subr.mxu0 0.0
    %226 = vmatpush1.msra.mxu0 0.0
    %227 = vmatprep.subr.mxu0 0.0
    %228 = vmatpush1.msra.mxu0 0.0
    %229 = vmatprep.subr.mxu0 0.0
    %230 = vmatpush1.msra.mxu0 0.0
    %231 = vmatprep.subr.mxu0 0.0
    %232 = vmatpush1.msra.mxu0 0.0
    %233 = vmatprep.subr.mxu0 0.0
    %234 = vmatpush1.msra.mxu0 0.0
    %235 = vmatprep.subr.mxu0 0.0
    %236 = vmatpush1.msra.mxu0 0.0
    %237 = vmatprep.subr.mxu0 0.0
    %238 = vmatpush1.msra.mxu0 0.0
    %239 = vmatprep.subr.mxu0 0.0
    %240 = vmatpush1.msra.mxu0 0.0
    %241 = vmatprep.subr.mxu0 0.0
    %242 = vmatpush1.msra.mxu0 0.0
    %243 = vmatprep.subr.mxu0 0.0
    %244 = vmatpush1.msra.mxu0 0.0
    %245 = vmatprep.subr.mxu0 0.0
    %246 = vmatpush1.msra.mxu0 0.0
    %247 = vmatprep.subr.mxu0 0.0
    %248 = vmatpush1.msra.mxu0 0.0
    %249 = vmatprep.subr.mxu0 0.0
    %250 = vmatpush1.msra.mxu0 0.0
    %251 = vmatprep.subr.mxu0 0.0
    %252 = vmatpush1.msra.mxu0 0.0
    %253 = vmatprep.subr.mxu0 0.0
    %254 = vmatpush1.msra.mxu0 0.0
    %255 = vmatprep.subr.mxu0 0.0
    %256 = vmatpush1.msra.mxu0 0.0
    %257 = vmatprep.mubr.f32.mxu0 0.0
    %258 = vmatmul.mubr.f32.gmra.mrb[0].mxu0 %v182
    %v259 = vpop.f32.mrb[0].mxu0
    %v260 = vadd.f32 %v163, %v259
    %v261 = vpop.f32.mrb[0].mxu0
    %262 = vmatprep.mubr.f32.mxu0 0.0
    %263 = vmatmul.mubr.f32.gmra.mrb[0].mxu0 %v185
    %v264 = vpop.f32.mrb[0].mxu0
    %v265 = vadd.f32 %v168, %v264
    %v266 = vpop.f32.mrb[0].mxu0
    %267 = vmatprep.mubr.f32.mxu0 0.0
    %268 = vmatmul.mubr.f32.gmra.mrb[0].mxu0 %v188
    %v269 = vpop.f32.mrb[0].mxu0
    %v270 = vadd.f32 %v173, %v269
    %v271 = vpop.f32.mrb[0].mxu0
    %272 = vmatprep.mubr.f32.mxu0 0.0
    %273 = vmatmul.mubr.f32.gmra.mrb[0].mxu0 %v191
    %v274 = vpop.f32.mrb[0].mxu0
    %v275 = vadd.f32 %v178, %v274
    %v276 = vpop.f32.mrb[0].mxu0
    %277 = vdwg.mxu0
    %v278 = vmax.f32 %v260, 0.0
    %v279 = vmax.f32 %v265, 0.0
    %v280 = vmax.f32 %v270, 0.0
    %v281 = vmax.f32 %v275, 0.0
    %v282 = vand.u32 2147483647, %v260
    %v283 = vand.u32 2147483647, %v265
    %v284 = vand.u32 2147483647, %v270
    %v285 = vand.u32 2147483647, %v275
    %v286 = vsub.f32 0.0, %v282
    %v287 = vsub.f32 0.0, %v283
    %v288 = vsub.f32 0.0, %v284
    %v289 = vsub.f32 0.0, %v285
    %v290 = vmul.f32 %v286, 1.442695
    %v291 = vpow.pop %v290
    %v292 = vmul.f32 %v287, 1.442695
    %v293 = vpow.pop %v292
    %v294 = vmul.f32 %v288, 1.442695
    %v295 = vpow.pop %v294
    %v296 = vmul.f32 %v289, 1.442695
    %v297 = vpow.pop %v296
    %v298 = vadd.f32 %v291, 1.0
    %v299 = vlog2.pop %v298
    %v300 = vmul.f32 %v299, 0.6931472
    %v301 = vmul.f32 -0.5, %v291
    %v302 = vadd.f32 %v301, 1.0
    %v303 = vmul.f32 %v302, %v291
    %v304 = vand.u32 2147483647, %v291
    %vm305 = vcmp.lt.f32.partialorder %v304, 0.0004427343
    %v306 = vsel %vm305, %v303, %v300
    %v307 = vadd.f32 %v293, 1.0
    %v308 = vlog2.pop %v307
    %v309 = vmul.f32 %v308, 0.6931472
    %v310 = vmul.f32 -0.5, %v293
    %v311 = vadd.f32 %v310, 1.0
    %v312 = vmul.f32 %v311, %v293
    %v313 = vand.u32 2147483647, %v293
    %vm314 = vcmp.lt.f32.partialorder %v313, 0.0004427343
    %v315 = vsel %vm314, %v312, %v309
    %v316 = vadd.f32 %v295, 1.0
    %v317 = vlog2.pop %v316
    %v318 = vmul.f32 %v317, 0.6931472
    %v319 = vmul.f32 -0.5, %v295
    %v320 = vadd.f32 %v319, 1.0
    %v321 = vmul.f32 %v320, %v295
    %v322 = vand.u32 2147483647, %v295
    %vm323 = vcmp.lt.f32.partialorder %v322, 0.0004427343
    %v324 = vsel %vm323, %v321, %v318
    %v325 = vadd.f32 %v297, 1.0
    %v326 = vlog2.pop %v325
    %v327 = vmul.f32 %v326, 0.6931472
    %v328 = vmul.f32 -0.5, %v297
    %v329 = vadd.f32 %v328, 1.0
    %v330 = vmul.f32 %v329, %v297
    %v331 = vand.u32 2147483647, %v297
    %vm332 = vcmp.lt.f32.partialorder %v331, 0.0004427343
    %v333 = vsel %vm332, %v330, %v327
    %v334 = vadd.f32 %v278, %v306
    %v335 = vadd.f32 %v279, %v315
    %v336 = vadd.f32 %v280, %v324
    %v337 = vadd.f32 %v281, %v333
    %v338 = vld [vmem:[%s5] sm:$0x1]
    %v339 = vld [vmem:[#allocation2] sm:$0x1]
    %341 = vset.pattern.permute.xlu0 0
    %342 = vperm.xlu0 %341, %v339
    %v343 = vpop.permute.xlu0 %342
    %v345 = vlaneseq
    %v346 = vshrl.u32 %v345, 7
    %v347 = vsub.s32 0, %v346
    %v348 = vrot.slane %v343, %v347
    %v350 = vsel %vm180, %v338, 0
    %352 = vmatprep.subr.mxu0 0.0
    %353 = vmatpush1.msra.mxu0 %v334
    %354 = vmatprep.subr.mxu0 0.0
    %355 = vmatpush1.msra.mxu0 %v335
    %356 = vmatprep.subr.mxu0 0.0
    %357 = vmatpush1.msra.mxu0 %v336
    %358 = vmatprep.subr.mxu0 0.0
    %359 = vmatpush1.msra.mxu0 %v337
    %360 = vmatprep.subr.mxu0 0.0
    %361 = vmatpush1.msra.mxu0 0.0
    %362 = vmatprep.subr.mxu0 0.0
    %363 = vmatpush1.msra.mxu0 0.0
    %364 = vmatprep.subr.mxu0 0.0
    %365 = vmatpush1.msra.mxu0 0.0
    %366 = vmatprep.subr.mxu0 0.0
    %367 = vmatpush1.msra.mxu0 0.0
    %368 = vmatprep.subr.mxu0 0.0
    %369 = vmatpush1.msra.mxu0 0.0
    %370 = vmatprep.subr.mxu0 0.0
    %371 = vmatpush1.msra.mxu0 0.0
    %372 = vmatprep.subr.mxu0 0.0
    %373 = vmatpush1.msra.mxu0 0.0
    %374 = vmatprep.subr.mxu0 0.0
    %375 = vmatpush1.msra.mxu0 0.0
    %376 = vmatprep.subr.mxu0 0.0
    %377 = vmatpush1.msra.mxu0 0.0
    %378 = vmatprep.subr.mxu0 0.0
    %379 = vmatpush1.msra.mxu0 0.0
    %380 = vmatprep.subr.mxu0 0.0
    %381 = vmatpush1.msra.mxu0 0.0
    %382 = vmatprep.subr.mxu0 0.0
    %383 = vmatpush1.msra.mxu0 0.0
    %384 = vmatprep.subr.mxu0 0.0
    %385 = vmatpush1.msra.mxu0 0.0
    %386 = vmatprep.subr.mxu0 0.0
    %387 = vmatpush1.msra.mxu0 0.0
    %388 = vmatprep.subr.mxu0 0.0
    %389 = vmatpush1.msra.mxu0 0.0
    %390 = vmatprep.subr.mxu0 0.0
    %391 = vmatpush1.msra.mxu0 0.0
    %392 = vmatprep.subr.mxu0 0.0
    %393 = vmatpush1.msra.mxu0 0.0
    %394 = vmatprep.subr.mxu0 0.0
    %395 = vmatpush1.msra.mxu0 0.0
    %396 = vmatprep.subr.mxu0 0.0
    %397 = vmatpush1.msra.mxu0 0.0
    %398 = vmatprep.subr.mxu0 0.0
    %399 = vmatpush1.msra.mxu0 0.0
    %400 = vmatprep.subr.mxu0 0.0
    %401 = vmatpush1.msra.mxu0 0.0
    %402 = vmatprep.subr.mxu0 0.0
    %403 = vmatpush1.msra.mxu0 0.0
    %404 = vmatprep.subr.mxu0 0.0
    %405 = vmatpush1.msra.mxu0 0.0
    %406 = vmatprep.subr.mxu0 0.0
    %407 = vmatpush1.msra.mxu0 0.0
    %408 = vmatprep.subr.mxu0 0.0
    %409 = vmatpush1.msra.mxu0 0.0
    %410 = vmatprep.subr.mxu0 0.0
    %411 = vmatpush1.msra.mxu0 0.0
    %412 = vmatprep.subr.mxu0 0.0
    %413 = vmatpush1.msra.mxu0 0.0
    %414 = vmatprep.subr.mxu0 0.0
    %415 = vmatpush1.msra.mxu0 0.0
    %416 = vmatprep.mubr.f32.mxu0 0.0
    %417 = vmatmul.mubr.f32.gmra.mrb[0].mxu0 %v350
    %v418 = vpop.f32.mrb[0].mxu0
    %v419 = vadd.f32 %v348, %v418
    %v420 = vpop.f32.mrb[0].mxu0
    %421 = vdwg.mxu0
    %vm422 = vcmask 57344
    %423 = vst.msk [vmem:[#allocation3] sm:$0x1] %vm422, %v419
    // Predicated region
    $region30: #{tpu_custom_call.1} parent=1 // pred_check
      _
    $region31: #{tpu_custom_call.1} parent=1 // pred_check_branch
      %425 = sbr.rel (0) target = $region33
    $region32: #{tpu_custom_call.1} parent=1 // pred_region
      %s427 = ssub.s32 16, 16
      %428 = vsyncadd [#allocation4], %s427
      %s430 = sshll.u32 [#allocation3], 4
      %s431 = int_to_ptr.vmem [resolvable:$true] %s430
      %433 = dma.vmem_to_hbm [thread:$0]  %s431, 16, %s7, [#allocation4]
    $region33: #{tpu_custom_call.1} parent=1 // pred_fallthru
      _
    // Predicated region
    $region34: #{tpu_custom_call.1} parent=1 // pred_check
      _
    $region35: #{tpu_custom_call.1} parent=1 // pred_check_branch
      %435 = sbr.rel (0) target = $region37
    $region36: #{tpu_custom_call.1} parent=1 // pred_region
      %436 = dma.done [#allocation4], 16
    $region37: #{tpu_custom_call.1} parent=1 // pred_fallthru
      _
    %437 = vsyncpa [#allocation4], 1

</llo_original>
